<compile_context>
chip_gen: v6e
topology: v6e:2x2x1
jax: 0.10.0
libtpu: 0.0.40
codegen_flags: <defaults>
</compile_context>

<pallas_src>
import functools

import jax
import jax.numpy as jnp
import numpy as np
from jax.experimental import pallas as pl
from jax.experimental.pallas import tpu as pltpu

_LANE = 128  # aligned zero-pad width used for the channel-conv shifts


# --------------------------------------------------------------------------- #
# hardware query / tiling policy
# --------------------------------------------------------------------------- #
def _vmem_capacity_bytes():
    try:
        return int(pltpu.get_tpu_info().vmem_capacity_bytes)
    except Exception:
        return 64 * 1024 * 1024  # conservative: v7x per-TC VMEM


def _choose_batch_tile(B, per_elem_bytes, target_block_bytes):
    """Batch tile giving ~target-sized blocks AND >= min(B, 8) grid steps."""
    bt_size = max(1, int(target_block_bytes) // max(int(per_elem_bytes), 1))
    bt_steps = max(1, B // min(B, 8))
    return max(1, min(B, bt_size, bt_steps))


def _choose_hw_tile(HW, C, itemsize, target_block_bytes):
    """Lane-aligned spatial tile of ~target bytes for the two-pass fallback."""
    t = int(target_block_bytes) // max(C * itemsize, 1)
    t = max(_LANE, (t // _LANE) * _LANE)
    return HW if t >= HW else int(t)


# --------------------------------------------------------------------------- #
# kernels
# --------------------------------------------------------------------------- #
def _channel_conv_sigmoid(pooled, wt):
    """k-tap grouped conv across channels (zero padded) + sigmoid.

    pooled: (bt, C) f32 with C on lanes; wt: (k, C) f32.
    padded[:, _LANE + c] = pooled[:, c]; the shifted slice below reads exactly
    pooled[:, c + j - p] with zeros outside [0, C) (== F.unfold zero padding).
    """
    bt, C = pooled.shape
    k = wt.shape[0]
    p = (k - 1) // 2
    z = jnp.zeros((bt, _LANE), jnp.float32)
    padded = jnp.concatenate([z, pooled, z], axis=-1)         # (bt, C + 2*_LANE)
    logits = wt[0:1, :] * padded[:, _LANE - p:_LANE - p + C]
    for j in range(1, k):                                     # k is static & tiny -> unrolled
        s = _LANE + j - p
        logits = logits + wt[j:j + 1, :] * padded[:, s:s + C]
    return jax.nn.sigmoid(logits)                             # (bt, C) f32


def _eca_fused_kernel(x_ref, wt_ref, o_ref):
    """Single-pass path: full (bt, C, H*W) slab resident in VMEM."""
    bt, C, HW = x_ref.shape
    # f32 accumulation fused into the reduction (no block-sized f32 temp).
    pooled = jnp.sum(x_ref[...], axis=-1, dtype=jnp.float32) * (1.0 / HW)   # (bt, C)
    wt = wt_ref[...].astype(jnp.float32)                                    # (k, C)
    attn = _channel_conv_sigmoid(pooled, wt)                                # (bt, C)
    # broadcast-multiply / store in the input's native dtype (lane-dense)
    o_ref[...] = x_ref[...] * attn.astype(o_ref.dtype)[:, :, None]


def _eca_pool_attn_kernel(x_ref, wt_ref, attn_ref, *, hw_total, hw_tile):
    """Two-pass path, pass 1: accumulate the pool over HW tiles, finalize attn."""
    hwi = pl.program_id(1)

    @pl.when(hwi == 0)
    def _init():
        attn_ref[...] = jnp.zeros_like(attn_ref)

    xblk = x_ref[...]                                          # (1, C, hw_tile)
    if hw_total % hw_tile != 0:
        # mask the ragged HW tail (out-of-bounds reads are garbage)
        pos = hwi * hw_tile + jax.lax.broadcasted_iota(jnp.int32, (1, 1, hw_tile), 2)
        xblk = jnp.where(pos < hw_total, xblk, jnp.zeros_like(xblk))
    attn_ref[...] += jnp.sum(xblk, axis=-1, dtype=jnp.float32)[:, None, :]

    @pl.when(hwi == pl.num_programs(1) - 1)
    def _finalize():
        bt, _one, C = attn_ref.shape
        pooled = attn_ref[...].reshape(bt, C) * (1.0 / hw_total)
        wt = wt_ref[...].astype(jnp.float32)
        attn_ref[...] = _channel_conv_sigmoid(pooled, wt)[:, None, :]


def _eca_scale_kernel(x_ref, attn_ref, o_ref):
    """Two-pass path, pass 2: broadcast multiply by the per-channel attention."""
    o_ref[...] = x_ref[...] * attn_ref[...].astype(o_ref.dtype)   # (bt,C,hw)*(bt,C,1)


# --------------------------------------------------------------------------- #
# wrapper
# --------------------------------------------------------------------------- #
def eca_ns_forward(x, weight, *, target_block_bytes=4 << 20, force_two_pass=False):
    """x: (B, C, H, W); weight: (C, k) grouped Conv1d weight (torch (C,1,k) squeezed)."""
    B, C, H, W = x.shape
    k = int(weight.shape[1])
    assert k % 2 == 1, "ECA-NS expects an odd kernel_size"
    HW = H * W
    itemsize = jnp.dtype(x.dtype).itemsize
    per_elem = C * HW * itemsize

    # Flatten H,W so the kernel's last dim is lane-dense; NCHW is contiguous so
    # the reshape is free. Reshape back after the call.
    # TODO(synk): when HW % 128 != 0 and C % 128 == 0, a channels-last (bt,HW,C)
    # layout would give unmasked stores — only worth it if the surrounding XLA
    # layout makes the transpose free, so not done here.
    x3 = x.reshape(B, C, HW)
    wt = weight.T.astype(jnp.float32)                      # (k, C)

    vmem_cap = _vmem_capacity_bytes()
    vmem_cap_limit = int(vmem_cap * 0.82)                  # ~52 MiB (v7x) / ~105 MiB (v5e/v6e)
    headroom = 8 << 20

    single_pass = (not force_two_pass) and (4 * per_elem + headroom <= vmem_cap_limit)

    if single_pass:
        # ---------------- fast path: one pass over x (1R + 1W) ----------------
        bt = _choose_batch_tile(B, per_elem, target_block_bytes)
        nb = pl.cdiv(B, bt)
        need = 4 * bt * per_elem + 4 * k * C * 4 + (4 << 20)
        vmem_limit = int(min(vmem_cap_limit, max(need, 32 << 20)))
        out3 = pl.pallas_call(
            _eca_fused_kernel,
            out_shape=jax.ShapeDtypeStruct((B, C, HW), x.dtype),
            grid=(nb,),
            in_specs=[
                pl.BlockSpec((bt, C, HW), lambda b: (b, 0, 0)),
                pl.BlockSpec((k, C), lambda b: (0, 0)),
            ],
            out_specs=pl.BlockSpec((bt, C, HW), lambda b: (b, 0, 0)),
            compiler_params=pltpu.CompilerParams(
                dimension_semantics=("parallel",),
                vmem_limit_bytes=vmem_limit,
            ),
        )(x3, wt)
        return out3.reshape(B, C, H, W)

    # -------- two-pass fallback: (C, H*W) slab too big to be VMEM-resident --------
    # TODO(synk): extreme channel counts with tiny HW would want a channel split
    # with a (k-1)-halo instead of an HW split; not implemented here.
    hw_t = _choose_hw_tile(HW, C, itemsize, target_block_bytes)
    nhw = pl.cdiv(HW, hw_t)
    blk = C * hw_t * itemsize

    # pass 1: pooled accumulation across the "arbitrary" HW axis -> attn (B, 1, C) f32
    vmem_limit1 = int(min(vmem_cap_limit,
                          max(2 * blk + 2 * C * 4 + 2 * k * C * 4 + (4 << 20), 32 << 20)))
    attn = pl.pallas_call(
        functools.partial(_eca_pool_attn_kernel, hw_total=HW, hw_tile=hw_t),
        out_shape=jax.ShapeDtypeStruct((B, 1, C), jnp.float32),
        grid=(B, nhw),
        in_specs=[
            pl.BlockSpec((1, C, hw_t), lambda b, h: (b, 0, h)),
            pl.BlockSpec((k, C), lambda b, h: (0, 0)),
        ],
        out_specs=pl.BlockSpec((1, 1, C), lambda b, h: (b, 0, 0)),
        compiler_params=pltpu.CompilerParams(
            dimension_semantics=("parallel", "arbitrary"),
            vmem_limit_bytes=vmem_limit1,
        ),
    )(x3, wt)

    # tiny (B, C) reshape so the scale sits on the sublane axis for pass 2
    attn_c1 = attn.reshape(B, C, 1)

    # pass 2: broadcast multiply, fully parallel over (batch, HW) tiles
    vmem_limit2 = int(min(vmem_cap_limit, max(4 * blk + 4 * C * 4 + (4 << 20), 32 << 20)))
    out3 = pl.pallas_call(
        _eca_scale_kernel,
        out_shape=jax.ShapeDtypeStruct((B, C, HW), x.dtype),
        grid=(B, nhw),
        in_specs=[
            pl.BlockSpec((1, C, hw_t), lambda b, h: (b, 0, h)),
            pl.BlockSpec((1, C, 1), lambda b, h: (b, 0, 0)),
        ],
        out_specs=pl.BlockSpec((1, C, hw_t), lambda b, h: (b, 0, h)),
        compiler_params=pltpu.CompilerParams(
            dimension_semantics=("parallel", "parallel"),
            vmem_limit_bytes=vmem_limit2,
        ),
    )(x3, attn_c1)
    return out3.reshape(B, C, H, W)


# --------------------------------------------------------------------------- #
# pure-JAX reference (matches the PyTorch forward exactly)
# --------------------------------------------------------------------------- #
def eca_ns_reference(x, weight):
    B, C, H, W = x.shape
    k = weight.shape[1]
    p = (k - 1) // 2
    pooled = jnp.mean(x.astype(jnp.float32), axis=(2, 3))               # (B, C)
    pooled_pad = jnp.pad(pooled, ((0, 0), (p, p)))                      # (B, C + k - 1)
    patches = jnp.stack([pooled_pad[:, j:j + C] for j in range(k)], -1)  # (B, C, k)
    logits = jnp.sum(patches * weight[None, :, :].astype(jnp.float32), axis=-1)
    attn = jax.nn.sigmoid(logits)
    return x * attn.astype(x.dtype)[:, :, None, None]


if __name__ == "__main__":
    key = jax.random.PRNGKey(0)
    kx, kw = jax.random.split(key)
    ksize = 3

    # Case 1: fast single-pass path (bt=1, 4 grid steps).
    B, C, H, W = 4, 128, 16, 16
    x = jax.random.normal(kx, (B, C, H, W), dtype=jnp.float32)
    weight = jax.random.normal(kw, (C, ksize), dtype=jnp.float32) * 0.5
    out = jax.block_until_ready(eca_ns_forward(x, weight))
    np.testing.assert_allclose(np.asarray(out), np.asarray(eca_ns_reference(x, weight)),
                               rtol=1e-4, atol=1e-5)

    # Case 2: ragged last batch block on the fast path (B=17 -> bt=2, 9 steps).
    x2 = jax.random.normal(jax.random.PRNGKey(1), (17, 32, 8, 8), dtype=jnp.float32)
    w2 = jax.random.normal(jax.random.PRNGKey(2), (32, ksize), dtype=jnp.float32) * 0.5
    out2 = jax.block_until_ready(eca_ns_forward(x2, w2))
    np.testing.assert_allclose(np.asarray(out2), np.asarray(eca_ns_reference(x2, w2)),
                               rtol=1e-4, atol=1e-5)

    # Case 3: force the two-pass (large-slab) fallback with a small HW tile so the
    # HW reduction, output-resident accumulation and ragged-HW masking all run.
    x3 = jax.random.normal(jax.random.PRNGKey(3), (2, 128, 24, 24), dtype=jnp.float32)
    w3 = jax.random.normal(jax.random.PRNGKey(4), (128, ksize), dtype=jnp.float32) * 0.5
    out3 = jax.block_until_ready(
        eca_ns_forward(x3, w3, target_block_bytes=64 << 10, force_two_pass=True))
    np.testing.assert_allclose(np.asarray(out3), np.asarray(eca_ns_reference(x3, w3)),
                               rtol=1e-4, atol=1e-5)

    # Case 4: bf16 input exercises the fused f32 pool accumulation.
    xb = x.astype(jnp.bfloat16)
    out4 = jax.block_until_ready(eca_ns_forward(xb, weight))
    ref4 = eca_ns_reference(xb.astype(jnp.float32), weight)
    np.testing.assert_allclose(np.asarray(out4).astype(np.float32), np.asarray(ref4),
                               rtol=2e-2, atol=2e-2)

    print("KERNEL_OK")
</pallas_src>

<mosaic_0001>
module attributes {stable_mosaic.version = 11 : i64} {
  func.func @_eca_fused_kernel(%arg0: i32, %arg1: memref<1x128x256xf32, #tpu.memory_space<vmem>>, %arg2: memref<3x128xf32, #tpu.memory_space<vmem>>, %arg3: memref<1x128x256xf32, #tpu.memory_space<vmem>>) attributes {dimension_semantics = [#tpu.dimension_semantics<parallel>], iteration_bounds = array<i64: 4>, scalar_prefetch = 0 : i64, scratch_operands = 0 : i64, tpu.core_type = #tpu.core_type<tc>, window_params = [{transform_indices = @transform_0, window_bounds = array<i64: 1, 128, 256>}, {pipeline_mode = #tpu.pipeline_mode<synchronous>, transform_indices = @transform_1, window_bounds = array<i64: 3, 128>}, {transform_indices = @transform_2, window_bounds = array<i64: 1, 128, 256>}]} {
    %c0 = arith.constant 0 : index
    %c0_0 = arith.constant 0 : index
    %c0_1 = arith.constant 0 : index
    %0 = vector.load %arg1[%c0, %c0_0, %c0_1] : memref<1x128x256xf32, #tpu.memory_space<vmem>>, vector<1x128x256xf32>
    %cst = arith.constant dense<0.000000e+00> : vector<1x128xf32>
    %1 = vector.multi_reduction <add>, %0, %cst [2] : vector<1x128x256xf32> to vector<1x128xf32>
    %cst_2 = arith.constant 3.906250e-03 : f32
    %2 = vector.broadcast %cst_2 : f32 to vector<1x128xf32>
    %3 = arith.mulf %1, %2 : vector<1x128xf32>
    %c0_3 = arith.constant 0 : index
    %c0_4 = arith.constant 0 : index
    %4 = vector.load %arg2[%c0_3, %c0_4] : memref<3x128xf32, #tpu.memory_space<vmem>>, vector<3x128xf32>
    %cst_5 = arith.constant 0.000000e+00 : f32
    %5 = vector.broadcast %cst_5 : f32 to vector<1x128xf32>
    %6 = tpu.concatenate %5, %3, %5 in 1 : vector<1x128xf32>, vector<1x128xf32>, vector<1x128xf32> -> vector<1x384xf32>
    %7 = vector.extract_strided_slice %4 {offsets = [0, 0], sizes = [1, 128], strides = [1, 1]} : vector<3x128xf32> to vector<1x128xf32>
    %8 = vector.extract_strided_slice %6 {offsets = [0, 127], sizes = [1, 128], strides = [1, 1]} : vector<1x384xf32> to vector<1x128xf32>
    %9 = arith.mulf %7, %8 : vector<1x128xf32>
    %10 = vector.extract_strided_slice %4 {offsets = [1, 0], sizes = [1, 128], strides = [1, 1]} : vector<3x128xf32> to vector<1x128xf32>
    %11 = vector.extract_strided_slice %6 {offsets = [0, 128], sizes = [1, 128], strides = [1, 1]} : vector<1x384xf32> to vector<1x128xf32>
    %12 = arith.mulf %10, %11 : vector<1x128xf32>
    %13 = arith.addf %9, %12 : vector<1x128xf32>
    %14 = vector.extract_strided_slice %4 {offsets = [2, 0], sizes = [1, 128], strides = [1, 1]} : vector<3x128xf32> to vector<1x128xf32>
    %15 = vector.extract_strided_slice %6 {offsets = [0, 129], sizes = [1, 128], strides = [1, 1]} : vector<1x384xf32> to vector<1x128xf32>
    %16 = arith.mulf %14, %15 : vector<1x128xf32>
    %17 = arith.addf %13, %16 : vector<1x128xf32>
    %18 = arith.negf %17 : vector<1x128xf32>
    %19 = math.exp %18 : vector<1x128xf32>
    %cst_6 = arith.constant 1.000000e+00 : f32
    %20 = vector.broadcast %cst_6 : f32 to vector<1x128xf32>
    %21 = arith.addf %20, %19 : vector<1x128xf32>
    %22 = arith.divf %20, %21 : vector<1x128xf32>
    %c0_7 = arith.constant 0 : index
    %c0_8 = arith.constant 0 : index
    %c0_9 = arith.constant 0 : index
    %23 = vector.load %arg1[%c0_7, %c0_8, %c0_9] : memref<1x128x256xf32, #tpu.memory_space<vmem>>, vector<1x128x256xf32>
    %24 = vector.shape_cast %22 : vector<1x128xf32> to vector<1x128x1xf32>
    %25 = vector.broadcast %24 : vector<1x128x1xf32> to vector<1x128x256xf32>
    %26 = arith.mulf %23, %25 : vector<1x128x256xf32>
    %c0_10 = arith.constant 0 : index
    %c0_11 = arith.constant 0 : index
    %c0_12 = arith.constant 0 : index
    %27 = vector.load %arg3[%c0_10, %c0_11, %c0_12] : memref<1x128x256xf32, #tpu.memory_space<vmem>>, vector<1x128x256xf32>
    tpu.vector_store %arg3[%c0_10, %c0_11, %c0_12], %26 {strides = array<i32>} : memref<1x128x256xf32, #tpu.memory_space<vmem>>, vector<1x128x256xf32>,
    return
  }
  func.func @transform_0(%arg0: i32) -> (i32, i32, i32) {
    %c0_i32 = arith.constant 0 : i32
    %c0_i32_0 = arith.constant 0 : i32
    %c0_i32_1 = arith.constant 0 : i32
    return %arg0, %c0_i32, %c0_i32_0 : i32, i32, i32
  }
  func.func @transform_1(%arg0: i32) -> (i32, i32) {
    %c0_i32 = arith.constant 0 : i32
    %c0_i32_0 = arith.constant 0 : i32
    %c0_i32_1 = arith.constant 0 : i32
    return %c0_i32, %c0_i32_0 : i32, i32
  }
  func.func @transform_2(%arg0: i32) -> (i32, i32, i32) {
    %c0_i32 = arith.constant 0 : i32
    %c0_i32_0 = arith.constant 0 : i32
    %c0_i32_1 = arith.constant 0 : i32
    return %arg0, %c0_i32, %c0_i32_0 : i32, i32, i32
  }
}

</mosaic_0001>

<llo_original>
// kernel: tpu_custom_call.1
$region0: #{tpu_custom_call.1}
  #allocation0 [shape = 'u32[]', space=smem, size = 0x4, offset = 0x4, fixed_abs, tag = 'smem constant byte address 0x4 - core index']
  #allocation1 [shape = 'u32[144,128]{1,0:T(1,128)}', space=vmem, size = 0x12000, scoped, tag = 'internal scratch']
  %s0 = inlined_call_operand.hbm [shape: f32[4,128,256], index: 0, kind: input, shape index: {}]
  %s1 = inlined_call_operand.hbm [shape: f32[3,128], index: 1, kind: input, shape index: {}]
  %s2 = inlined_call_operand.hbm [shape: f32[4,128,256], index: 2, kind: output, shape index: {}]
  %s3 = sld [smem:[#allocation0]]
  $region49: #{tpu_custom_call.1} parent=0
    _
  %s5 = ssub.s32 1, %s3
  %s6 = scalar_select 0, %s5, %s3
  $region1: #{tpu_custom_call.1} parent=0
    #allocation2 [shape = 'u8[262144]{0}', space=vmem, size = 0x40000, scoped, tag = 'input window, operand 0']
    #allocation3 [shape = 's32[2]{0}', space=sflag, size = 0x8, scoped, tag = 'scoped memory for tpu_custom_call.1']
    #allocation4 [shape = 's32[2]{0}', space=sflag, size = 0x8, scoped, tag = 'scoped memory for tpu_custom_call.1']
    #allocation5 [shape = 'u8[2048]{0}', space=vmem, size = 0x800, scoped, tag = 'input window, operand 1, single buffered']
    #allocation6 [shape = 's32[1]{0}', space=sflag, size = 0x4, scoped, tag = 'scoped memory for tpu_custom_call.1']
    #allocation7 [shape = 'u8[262144]{0}', space=vmem, size = 0x40000, scoped, tag = 'output window, operand 0']
    %7 = vsyncpa [#allocation3], 0
    %s8 = scalar_lea.sflag [#allocation3], 1
    %9 = vsyncpa %s8, 0
    %10 = vsyncpa [#allocation6], 0
    %11 = vsyncpa [#allocation4], 0
    %s12 = scalar_lea.sflag [#allocation4], 1
    %13 = vsyncpa %s12, 0
    loop: start=0, step=1, limit=6
    $region2: #{tpu_custom_call.1} parent=1 // loop_pre_header
      _
    $region3: #{tpu_custom_call.1} parent=1 // loop_header
      %s15 = sphi 0, %s19
      %p16 = scmp.ge.s32.totalorder %s15, 6
      %s25 = sphi 0, %s27
      %s28 = sphi 0, %s25
      %s29 = sphi 0, %s28
      %s45 = sphi 0, %s29
      %s49 = sphi 0, %s49
      %s51 = sphi 0, %s49
      %s52 = sphi 0, %s51
      %s66 = sphi 0, %s52
      %s72 = sphi 0, %s74
      %s75 = sphi 0, %s72
      %s76 = sphi 0, %s75
      %s92 = sphi 0, %s76
    $region4: #{tpu_custom_call.1} parent=1 // loop_header_branch
      %18 = sbr.rel (%p16) target = $region8
    $region5: #{tpu_custom_call.1} parent=1 // loop_body
      %s20 = ssub.s32 %s15, 1
      %s21 = ssub.s32 %s15, 2
      %s22 = sadd.s32 %s15, 1
      %s23 = ssub.s32 %s15, %s22
      %p24 = scmp.eq.s32.totalorder %s23, 0
      %s26 = sadd.s32 %s25, 1
      %s27 = scalar_select %p24, %s25, %s26
      %p30 = pneg %p24
      %p31 = scmp.eq.s32.totalorder %s15, 3
      %p32 = por %p30, %p31
      %p33 = scmp.ne.s32.totalorder %s25, %s28
      %p34 = scmp.eq.s32.totalorder %s15, 0
      %p35 = por %p33, %p34
      %p36 = scmp.ne.s32.totalorder %s25, %s28
      %p37 = scmp.eq.s32.totalorder %s20, 3
      %p38 = por %p36, %p37
      %p39 = scmp.ne.s32.totalorder %s28, %s29
      %p40 = scmp.eq.s32.totalorder %s20, 0
      %p41 = por %p39, %p40
      %p42 = scmp.ne.s32.totalorder %s28, %s29
      %p43 = scmp.eq.s32.totalorder %s21, 3
      %p44 = por %p42, %p43
      %p46 = scmp.ne.s32.totalorder %s29, %s45
      %p47 = scmp.eq.s32.totalorder %s21, 0
      %p48 = por %p46, %p47
      %s50 = sadd.s32 %s49, 1
      %p53 = scmp.eq.s32.totalorder %s15, 3
      %p54 = scmp.ne.s32.totalorder %s49, %s51
      %p55 = scmp.eq.s32.totalorder %s15, 0
      %p56 = por %p54, %p55
      %p57 = scmp.ne.s32.totalorder %s49, %s51
      %p58 = scmp.eq.s32.totalorder %s20, 3
      %p59 = por %p57, %p58
      %p60 = scmp.ne.s32.totalorder %s51, %s52
      %p61 = scmp.eq.s32.totalorder %s20, 0
      %p62 = por %p60, %p61
      %p63 = scmp.ne.s32.totalorder %s51, %s52
      %p64 = scmp.eq.s32.totalorder %s21, 3
      %p65 = por %p63, %p64
      %p67 = scmp.ne.s32.totalorder %s52, %s66
      %p68 = scmp.eq.s32.totalorder %s21, 0
      %p69 = por %p67, %p68
      %s70 = ssub.s32 %s15, %s22
      %p71 = scmp.eq.s32.totalorder %s70, 0
      %s73 = sadd.s32 %s72, 1
      %s74 = scalar_select %p71, %s72, %s73
      %p77 = pneg %p71
      %p78 = scmp.eq.s32.totalorder %s15, 3
      %p79 = por %p77, %p78
      %p80 = scmp.ne.s32.totalorder %s72, %s75
      %p81 = scmp.eq.s32.totalorder %s15, 0
      %p82 = por %p80, %p81
      %p83 = scmp.ne.s32.totalorder %s72, %s75
      %p84 = scmp.eq.s32.totalorder %s20, 3
      %p85 = por %p83, %p84
      %p86 = scmp.ne.s32.totalorder %s75, %s76
      %p87 = scmp.eq.s32.totalorder %s20, 0
      %p88 = por %p86, %p87
      %p89 = scmp.ne.s32.totalorder %s75, %s76
      %p90 = scmp.eq.s32.totalorder %s21, 3
      %p91 = por %p89, %p90
      %p93 = scmp.ne.s32.totalorder %s76, %s92
      %p94 = scmp.eq.s32.totalorder %s21, 0
      %p95 = por %p93, %p94
      %p96 = scmp.le.s32.totalorder 1, %s15
      %p97 = scmp.lt.s32.totalorder %s15, 5
      %p98 = pnand %p96, %p97
      %p99 = pneg %p98
      // Predicated region
      $region9: #{tpu_custom_call.1} parent=5 // pred_check
        _
      $region10: #{tpu_custom_call.1} parent=5 // pred_check_branch
        %101 = sbr.rel (%p98) target = $region12
      $region11: #{tpu_custom_call.1} parent=5 // pred_region
        %s102 = ssub.s32 %s15, 1
        // Predicated region
        $region13: #{tpu_custom_call.1} parent=11 // pred_check
          %p103 = pneg %p62
        $region14: #{tpu_custom_call.1} parent=11 // pred_check_branch
          %105 = sbr.rel (%p103) target = $region16
        $region15: #{tpu_custom_call.1} parent=11 // pred_region
          %s107 = ssub.s32 64, 64
          %108 = vsyncadd [#allocation6], %s107
          %s110 = sshll.u32 [#allocation5], 4
          %s111 = int_to_ptr.vmem [resolvable:$true] %s110
          %113 = dma.hbm_to_vmem [thread:$0]  %s1, 64, %s111, [#allocation6]
        $region16: #{tpu_custom_call.1} parent=11 // pred_fallthru
          _
      $region12: #{tpu_custom_call.1} parent=5 // pred_fallthru
        _
      %p114 = scmp.lt.s32.totalorder %s15, 4
      // Predicated region
      $region17: #{tpu_custom_call.1} parent=5 // pred_check
        %p115 = pneg %p114
      $region18: #{tpu_custom_call.1} parent=5 // pred_check_branch
        %117 = sbr.rel (%p115) target = $region20
      $region19: #{tpu_custom_call.1} parent=5 // pred_region
        // Predicated region
        $region21: #{tpu_custom_call.1} parent=19 // pred_check
          %p118 = pneg %p35
        $region22: #{tpu_custom_call.1} parent=19 // pred_check_branch
          %120 = sbr.rel (%p118) target = $region24
        $region23: #{tpu_custom_call.1} parent=19 // pred_region
          %s121 = sand.u32 %s25, 1
          %s122 = scalar_lea.sflag [#allocation3], %s121
          %s123 = sand.u32 %s25, 1
          %s124 = smul.addr %s123, 256
          %s125 = scalar_lea.vmem [#allocation2], %s124
          %s127 = ssub.s32 4096, 4096
          %128 = vsyncadd %s122, %s127
          %s129 = smul.addr %s15, 32
          %s130 = smul.addr %s129, 128
          %s131 = scalar_lea.hbm %s0, %s130
          %s132 = sshll.u32 %s125, 4
          %s133 = int_to_ptr.vmem [resolvable:$true] %s132
          %138 = dma.hbm_to_vmem [thread:$0]  %s131, 4096, %s133, %s122, 256, 256, 16
        $region24: #{tpu_custom_call.1} parent=19 // pred_fallthru
          _
      $region20: #{tpu_custom_call.1} parent=5 // pred_fallthru
        _
      %p139 = scmp.le.s32.totalorder 1, %s15
      %p140 = scmp.lt.s32.totalorder %s15, 5
      %p141 = pnand %p139, %p140
      %p142 = pneg %p141
      // Predicated region
      $region25: #{tpu_custom_call.1} parent=5 // pred_check
        _
      $region26: #{tpu_custom_call.1} parent=5 // pred_check_branch
        %144 = sbr.rel (%p141) target = $region28
      $region27: #{tpu_custom_call.1} parent=5 // pred_region
        %s145 = ssub.s32 %s15, 1
        %s146 = sand.u32 %s28, 1
        %s147 = scalar_lea.sflag [#allocation3], %s146
        %s148 = sand.u32 %s28, 1
        %s149 = smul.addr %s148, 256
        %s150 = scalar_lea.vmem [#allocation2], %s149
        // Predicated region
        $region29: #{tpu_custom_call.1} parent=27 // pred_check
          %p151 = pneg %p41
        $region30: #{tpu_custom_call.1} parent=27 // pred_check_branch
          %153 = sbr.rel (%p151) target = $region32
        $region31: #{tpu_custom_call.1} parent=27 // pred_region
          %154 = dma.done %s147, 4096
        $region32: #{tpu_custom_call.1} parent=27 // pred_fallthru
          _
        // Predicated region
        $region33: #{tpu_custom_call.1} parent=27 // pred_check
          %p155 = pneg %p62
        $region34: #{tpu_custom_call.1} parent=27 // pred_check_branch
          %157 = sbr.rel (%p155) target = $region36
        $region35: #{tpu_custom_call.1} parent=27 // pred_region
          %158 = dma.done [#allocation6], 64
        $region36: #{tpu_custom_call.1} parent=27 // pred_fallthru
          _
        %s159 = sand.u32 %s28, 1
        %s160 = scalar_lea.sflag [#allocation3], %s159
        %s161 = sand.u32 %s28, 1
        %s162 = smul.addr %s161, 256
        %s163 = scalar_lea.vmem [#allocation2], %s162
        %p164 = pneg %p41
        %p165 = pneg %p38
        %p166 = pneg %p62
        %p167 = pneg %p59
        %p168 = pneg %p88
        %p169 = pneg %p85
        %s170 = sand.u32 %s75, 1
        %s171 = scalar_lea.sflag [#allocation4], %s170
        %s172 = sand.u32 %s75, 1
        %s173 = smul.addr %s172, 256
        %s174 = scalar_lea.vmem [#allocation7], %s173
        %v175 = vld [vmem:[%s150] sm:$0xff]
        %v176 = vld [vmem:[%s150 + $0x8] sm:$0xff]
        %v177 = vld [vmem:[%s150 + $0x10] sm:$0xff]
        %v178 = vld [vmem:[%s150 + $0x18] sm:$0xff]
        %v179 = vld [vmem:[%s150 + $0x20] sm:$0xff]
        %v180 = vld [vmem:[%s150 + $0x28] sm:$0xff]
        %v181 = vld [vmem:[%s150 + $0x30] sm:$0xff]
        %v182 = vld [vmem:[%s150 + $0x38] sm:$0xff]
        %v183 = vld [vmem:[%s150 + $0x40] sm:$0xff]
        %v184 = vld [vmem:[%s150 + $0x48] sm:$0xff]
        %v185 = vld [vmem:[%s150 + $0x50] sm:$0xff]
        %v186 = vld [vmem:[%s150 + $0x58] sm:$0xff]
        %v187 = vld [vmem:[%s150 + $0x60] sm:$0xff]
        %v188 = vld [vmem:[%s150 + $0x68] sm:$0xff]
        %v189 = vld [vmem:[%s150 + $0x70] sm:$0xff]
        %v190 = vld [vmem:[%s150 + $0x78] sm:$0xff]
        %v191 = vld [vmem:[%s150 + $0x80] sm:$0xff]
        %v192 = vld [vmem:[%s150 + $0x88] sm:$0xff]
        %v193 = vld [vmem:[%s150 + $0x90] sm:$0xff]
        %v194 = vld [vmem:[%s150 + $0x98] sm:$0xff]
        %v195 = vld [vmem:[%s150 + $0xa0] sm:$0xff]
        %v196 = vld [vmem:[%s150 + $0xa8] sm:$0xff]
        %v197 = vld [vmem:[%s150 + $0xb0] sm:$0xff]
        %v198 = vld [vmem:[%s150 + $0xb8] sm:$0xff]
        %v199 = vld [vmem:[%s150 + $0xc0] sm:$0xff]
        %v200 = vld [vmem:[%s150 + $0xc8] sm:$0xff]
        %v201 = vld [vmem:[%s150 + $0xd0] sm:$0xff]
        %v202 = vld [vmem:[%s150 + $0xd8] sm:$0xff]
        %v203 = vld [vmem:[%s150 + $0xe0] sm:$0xff]
        %v204 = vld [vmem:[%s150 + $0xe8] sm:$0xff]
        %v205 = vld [vmem:[%s150 + $0xf0] sm:$0xff]
        %v206 = vld [vmem:[%s150 + $0xf8] sm:$0xff]
        %v207 = vadd.f32 %v175, %v176
        %208 = vadd.xlane.f32.xlu0 %v207
        %v209 = vpop.xlane.xlu0 %208
        %v210 = vadd.f32 %v177, %v178
        %211 = vadd.xlane.f32.xlu0 %v210
        %v212 = vpop.xlane.xlu0 %211
        %v213 = vadd.f32 %v179, %v180
        %214 = vadd.xlane.f32.xlu0 %v213
        %v215 = vpop.xlane.xlu0 %214
        %v216 = vadd.f32 %v181, %v182
        %217 = vadd.xlane.f32.xlu0 %v216
        %v218 = vpop.xlane.xlu0 %217
        %v219 = vadd.f32 %v183, %v184
        %220 = vadd.xlane.f32.xlu0 %v219
        %v221 = vpop.xlane.xlu0 %220
        %v222 = vadd.f32 %v185, %v186
        %223 = vadd.xlane.f32.xlu0 %v222
        %v224 = vpop.xlane.xlu0 %223
        %v225 = vadd.f32 %v187, %v188
        %226 = vadd.xlane.f32.xlu0 %v225
        %v227 = vpop.xlane.xlu0 %226
        %v228 = vadd.f32 %v189, %v190
        %229 = vadd.xlane.f32.xlu0 %v228
        %v230 = vpop.xlane.xlu0 %229
        %v231 = vadd.f32 %v191, %v192
        %232 = vadd.xlane.f32.xlu0 %v231
        %v233 = vpop.xlane.xlu0 %232
        %v234 = vadd.f32 %v193, %v194
        %235 = vadd.xlane.f32.xlu0 %v234
        %v236 = vpop.xlane.xlu0 %235
        %v237 = vadd.f32 %v195, %v196
        %238 = vadd.xlane.f32.xlu0 %v237
        %v239 = vpop.xlane.xlu0 %238
        %v240 = vadd.f32 %v197, %v198
        %241 = vadd.xlane.f32.xlu0 %v240
        %v242 = vpop.xlane.xlu0 %241
        %v243 = vadd.f32 %v199, %v200
        %244 = vadd.xlane.f32.xlu0 %v243
        %v245 = vpop.xlane.xlu0 %244
        %v246 = vadd.f32 %v201, %v202
        %247 = vadd.xlane.f32.xlu0 %v246
        %v248 = vpop.xlane.xlu0 %247
        %v249 = vadd.f32 %v203, %v204
        %250 = vadd.xlane.f32.xlu0 %v249
        %v251 = vpop.xlane.xlu0 %250
        %v252 = vadd.f32 %v205, %v206
        %253 = vadd.xlane.f32.xlu0 %v252
        %v254 = vpop.xlane.xlu0 %253
        %v255 = vmul.f32 %v209, 0.00390625
        %v256 = vmul.f32 %v212, 0.00390625
        %v257 = vmul.f32 %v215, 0.00390625
        %v258 = vmul.f32 %v218, 0.00390625
        %v259 = vmul.f32 %v221, 0.00390625
        %v260 = vmul.f32 %v224, 0.00390625
        %v261 = vmul.f32 %v227, 0.00390625
        %v262 = vmul.f32 %v230, 0.00390625
        %v263 = vmul.f32 %v233, 0.00390625
        %v264 = vmul.f32 %v236, 0.00390625
        %v265 = vmul.f32 %v239, 0.00390625
        %v266 = vmul.f32 %v242, 0.00390625
        %v267 = vmul.f32 %v245, 0.00390625
        %v268 = vmul.f32 %v248, 0.00390625
        %v269 = vmul.f32 %v251, 0.00390625
        %v270 = vmul.f32 %v254, 0.00390625
        %v271 = vld [vmem:[#allocation5] sm:$0x7]
        %v288 = vlaneseq
        %v289 = vand.u32 %v288, 127
        %v290 = vlaneseq
        %v291 = vshrl.u32 %v290, 7
        %v292 = vsub.s32 %v289, %v291
        %v293 = vrot.slane %v255, %v292
        %v294 = vadd.s32 %v289, 4294967288
        %v295 = vlaneseq
        %v296 = vshrl.u32 %v295, 7
        %v297 = vsub.s32 %v294, %v296
        %v298 = vrot.slane %v256, %v297
        %vm299 = vcmask 130112
        %v300 = vsel %vm299, %v298, %v293
        %v301 = vadd.s32 %v289, 4294967280
        %v302 = vlaneseq
        %v303 = vshrl.u32 %v302, 7
        %v304 = vsub.s32 %v301, %v303
        %v305 = vrot.slane %v257, %v304
        %vm306 = vcmask 195712
        %v307 = vsel %vm306, %v305, %v300
        %v308 = vadd.s32 %v289, 4294967272
        %v309 = vlaneseq
        %v310 = vshrl.u32 %v309, 7
        %v311 = vsub.s32 %v308, %v310
        %v312 = vrot.slane %v258, %v311
        %vm313 = vcmask 261312
        %v314 = vsel %vm313, %v312, %v307
        %v315 = vadd.s32 %v289, 4294967264
        %v316 = vlaneseq
        %v317 = vshrl.u32 %v316, 7
        %v318 = vsub.s32 %v315, %v317
        %v319 = vrot.slane %v259, %v318
        %vm320 = vcmask 326912
        %v321 = vsel %vm320, %v319, %v314
        %v322 = vadd.s32 %v289, 4294967256
        %v323 = vlaneseq
        %v324 = vshrl.u32 %v323, 7
        %v325 = vsub.s32 %v322, %v324
        %v326 = vrot.slane %v260, %v325
        %vm327 = vcmask 392512
        %v328 = vsel %vm327, %v326, %v321
        %v329 = vadd.s32 %v289, 4294967248
        %v330 = vlaneseq
        %v331 = vshrl.u32 %v330, 7
        %v332 = vsub.s32 %v329, %v331
        %v333 = vrot.slane %v261, %v332
        %vm334 = vcmask 458112
        %v335 = vsel %vm334, %v333, %v328
        %v336 = vadd.s32 %v289, 4294967240
        %v337 = vlaneseq
        %v338 = vshrl.u32 %v337, 7
        %v339 = vsub.s32 %v336, %v338
        %v340 = vrot.slane %v262, %v339
        %vm341 = vcmask 523712
        %v342 = vsel %vm341, %v340, %v335
        %v343 = vadd.s32 %v289, 4294967232
        %v344 = vlaneseq
        %v345 = vshrl.u32 %v344, 7
        %v346 = vsub.s32 %v343, %v345
        %v347 = vrot.slane %v263, %v346
        %vm348 = vcmask 589312
        %v349 = vsel %vm348, %v347, %v342
        %v350 = vadd.s32 %v289, 4294967224
        %v351 = vlaneseq
        %v352 = vshrl.u32 %v351, 7
        %v353 = vsub.s32 %v350, %v352
        %v354 = vrot.slane %v264, %v353
        %vm355 = vcmask 654912
        %v356 = vsel %vm355, %v354, %v349
        %v357 = vadd.s32 %v289, 4294967216
        %v358 = vlaneseq
        %v359 = vshrl.u32 %v358, 7
        %v360 = vsub.s32 %v357, %v359
        %v361 = vrot.slane %v265, %v360
        %vm362 = vcmask 720512
        %v363 = vsel %vm362, %v361, %v356
        %v364 = vadd.s32 %v289, 4294967208
        %v365 = vlaneseq
        %v366 = vshrl.u32 %v365, 7
        %v367 = vsub.s32 %v364, %v366
        %v368 = vrot.slane %v266, %v367
        %vm369 = vcmask 786112
        %v370 = vsel %vm369, %v368, %v363
        %v371 = vadd.s32 %v289, 4294967200
        %v372 = vlaneseq
        %v373 = vshrl.u32 %v372, 7
        %v374 = vsub.s32 %v371, %v373
        %v375 = vrot.slane %v267, %v374
        %vm376 = vcmask 851712
        %v377 = vsel %vm376, %v375, %v370
        %v378 = vadd.s32 %v289, 4294967192
        %v379 = vlaneseq
        %v380 = vshrl.u32 %v379, 7
        %v381 = vsub.s32 %v378, %v380
        %v382 = vrot.slane %v268, %v381
        %vm383 = vcmask 917312
        %v384 = vsel %vm383, %v382, %v377
        %v385 = vadd.s32 %v289, 4294967184
        %v386 = vlaneseq
        %v387 = vshrl.u32 %v386, 7
        %v388 = vsub.s32 %v385, %v387
        %v389 = vrot.slane %v269, %v388
        %vm390 = vcmask 982912
        %v391 = vsel %vm390, %v389, %v384
        %v392 = vadd.s32 %v289, 4294967176
        %v393 = vlaneseq
        %v394 = vshrl.u32 %v393, 7
        %v395 = vsub.s32 %v392, %v394
        %v396 = vrot.slane %v270, %v395
        %vm397 = vcmask 1048512
        %v398 = vsel %vm397, %v396, %v391
        %400 = vrot.lane.b32.xlu0 0.0, 1
        %v401 = vpop.permute.xlu0 %400
        %402 = vrot.lane.b32.xlu0 %v398, 1
        %v403 = vpop.permute.xlu0 %402
        %vm404 = vcmask 7168
        %v405 = vsel %vm404, %v401, %v403
        %v407 = vmul.f32 %v271, %v405
        %v408 = vrot.slane %v398, 7
        %v410 = vmul.f32 %v271, %v408
        %v412 = vrot.slane %v410, 1
        %v414 = vadd.f32 %v407, %v412
        %v415 = vrot.slane %v398, 6
        %v416 = vrot.slane 0.0, 6
        %417 = vrot.lane.b32.xlu0 %v415, 127
        %v418 = vpop.permute.xlu0 %417
        %419 = vrot.lane.b32.xlu0 %v416, 127
        %v420 = vpop.permute.xlu0 %419
        %vm421 = vcmask 1039360
        %v422 = vsel %vm421, %v418, %v420
        %v424 = vmul.f32 %v271, %v422
        %v426 = vrot.slane %v424, 2
        %v428 = vadd.f32 %v414, %v426
        %v429 = vxor.u32 %v428, 2147483648
        %v430 = vmul.f32 %v429, 1.442695
        %v431 = vpow.pop %v430
        %v432 = vadd.f32 %v431, 1.0
        %v433 = vrcp.pop %v432
        %v434 = vmul.f32 1.0, %v433
        %v435 = vlaneseq
        %v436 = vshrl.u32 %v435, 7
        %v437 = vsub.s32 0, %v436
        %v438 = vrot.slane %v434, %v437
        %440 = vbcast.lane.b32.xlu0 %v438, 256
        %v441 = vpop.permute.xlu0 %440
        %s443 = sor.u32 256, 8
        %444 = vbcast.lane.b32.xlu0 %v438, %s443
        %v445 = vpop.permute.xlu0 %444
        %s447 = sor.u32 256, 16
        %448 = vbcast.lane.b32.xlu0 %v438, %s447
        %v449 = vpop.permute.xlu0 %448
        %s451 = sor.u32 256, 24
        %452 = vbcast.lane.b32.xlu0 %v438, %s451
        %v453 = vpop.permute.xlu0 %452
        %s455 = sor.u32 256, 32
        %456 = vbcast.lane.b32.xlu0 %v438, %s455
        %v457 = vpop.permute.xlu0 %456
        %s459 = sor.u32 256, 40
        %460 = vbcast.lane.b32.xlu0 %v438, %s459
        %v461 = vpop.permute.xlu0 %460
        %s463 = sor.u32 256, 48
        %464 = vbcast.lane.b32.xlu0 %v438, %s463
        %v465 = vpop.permute.xlu0 %464
        %s467 = sor.u32 256, 56
        %468 = vbcast.lane.b32.xlu0 %v438, %s467
        %v469 = vpop.permute.xlu0 %468
        %s471 = sor.u32 256, 64
        %472 = vbcast.lane.b32.xlu0 %v438, %s471
        %v473 = vpop.permute.xlu0 %472
        %s475 = sor.u32 256, 72
        %476 = vbcast.lane.b32.xlu0 %v438, %s475
        %v477 = vpop.permute.xlu0 %476
        %s479 = sor.u32 256, 80
        %480 = vbcast.lane.b32.xlu0 %v438, %s479
        %v481 = vpop.permute.xlu0 %480
        %s483 = sor.u32 256, 88
        %484 = vbcast.lane.b32.xlu0 %v438, %s483
        %v485 = vpop.permute.xlu0 %484
        %s487 = sor.u32 256, 96
        %488 = vbcast.lane.b32.xlu0 %v438, %s487
        %v489 = vpop.permute.xlu0 %488
        %s491 = sor.u32 256, 104
        %492 = vbcast.lane.b32.xlu0 %v438, %s491
        %v493 = vpop.permute.xlu0 %492
        %s495 = sor.u32 256, 112
        %496 = vbcast.lane.b32.xlu0 %v438, %s495
        %v497 = vpop.permute.xlu0 %496
        %s499 = sor.u32 256, 120
        %500 = vbcast.lane.b32.xlu0 %v438, %s499
        %v501 = vpop.permute.xlu0 %500
        %v502 = vmul.f32 %v175, %v441
        %v503 = vmul.f32 %v176, %v441
        %v504 = vmul.f32 %v177, %v445
        %v505 = vmul.f32 %v178, %v445
        %v506 = vmul.f32 %v179, %v449
        %v507 = vmul.f32 %v180, %v449
        %v508 = vmul.f32 %v181, %v453
        %v509 = vmul.f32 %v182, %v453
        %v510 = vmul.f32 %v183, %v457
        %v511 = vmul.f32 %v184, %v457
        %v512 = vmul.f32 %v185, %v461
        %v513 = vmul.f32 %v186, %v461
        %v514 = vmul.f32 %v187, %v465
        %v515 = vmul.f32 %v188, %v465
        %v516 = vmul.f32 %v189, %v469
        %v517 = vmul.f32 %v190, %v469
        %v518 = vmul.f32 %v191, %v473
        %v519 = vmul.f32 %v192, %v473
        %v520 = vmul.f32 %v193, %v477
        %v521 = vmul.f32 %v194, %v477
        %v522 = vmul.f32 %v195, %v481
        %v523 = vmul.f32 %v196, %v481
        %v524 = vmul.f32 %v197, %v485
        %v525 = vmul.f32 %v198, %v485
        %v526 = vmul.f32 %v199, %v489
        %v527 = vmul.f32 %v200, %v489
        %v528 = vmul.f32 %v201, %v493
        %v529 = vmul.f32 %v202, %v493
        %v530 = vmul.f32 %v203, %v497
        %v531 = vmul.f32 %v204, %v497
        %v532 = vmul.f32 %v205, %v501
        %v533 = vmul.f32 %v206, %v501
        %534 = vst [vmem:[%s174] sm:$0xff] %v502
        %535 = vst [vmem:[%s174 + $0x8] sm:$0xff] %v503
        %536 = vst [vmem:[%s174 + $0x10] sm:$0xff] %v504
        %537 = vst [vmem:[%s174 + $0x18] sm:$0xff] %v505
        %538 = vst [vmem:[%s174 + $0x20] sm:$0xff] %v506
        %539 = vst [vmem:[%s174 + $0x28] sm:$0xff] %v507
        %540 = vst [vmem:[%s174 + $0x30] sm:$0xff] %v508
        %541 = vst [vmem:[%s174 + $0x38] sm:$0xff] %v509
        %542 = vst [vmem:[%s174 + $0x40] sm:$0xff] %v510
        %543 = vst [vmem:[%s174 + $0x48] sm:$0xff] %v511
        %544 = vst [vmem:[%s174 + $0x50] sm:$0xff] %v512
        %545 = vst [vmem:[%s174 + $0x58] sm:$0xff] %v513
        %546 = vst [vmem:[%s174 + $0x60] sm:$0xff] %v514
        %547 = vst [vmem:[%s174 + $0x68] sm:$0xff] %v515
        %548 = vst [vmem:[%s174 + $0x70] sm:$0xff] %v516
        %549 = vst [vmem:[%s174 + $0x78] sm:$0xff] %v517
        %550 = vst [vmem:[%s174 + $0x80] sm:$0xff] %v518
        %551 = vst [vmem:[%s174 + $0x88] sm:$0xff] %v519
        %552 = vst [vmem:[%s174 + $0x90] sm:$0xff] %v520
        %553 = vst [vmem:[%s174 + $0x98] sm:$0xff] %v521
        %554 = vst [vmem:[%s174 + $0xa0] sm:$0xff] %v522
        %555 = vst [vmem:[%s174 + $0xa8] sm:$0xff] %v523
        %556 = vst [vmem:[%s174 + $0xb0] sm:$0xff] %v524
        %557 = vst [vmem:[%s174 + $0xb8] sm:$0xff] %v525
        %558 = vst [vmem:[%s174 + $0xc0] sm:$0xff] %v526
        %559 = vst [vmem:[%s174 + $0xc8] sm:$0xff] %v527
        %560 = vst [vmem:[%s174 + $0xd0] sm:$0xff] %v528
        %561 = vst [vmem:[%s174 + $0xd8] sm:$0xff] %v529
        %562 = vst [vmem:[%s174 + $0xe0] sm:$0xff] %v530
        %563 = vst [vmem:[%s174 + $0xe8] sm:$0xff] %v531
        %564 = vst [vmem:[%s174 + $0xf0] sm:$0xff] %v532
        %565 = vst [vmem:[%s174 + $0xf8] sm:$0xff] %v533
        %s566 = sand.u32 %s75, 1
        %s567 = scalar_lea.sflag [#allocation4], %s566
        %s568 = sand.u32 %s75, 1
        %s569 = smul.addr %s568, 256
        %s570 = scalar_lea.vmem [#allocation7], %s569
        // Predicated region
        $region37: #{tpu_custom_call.1} parent=27 // pred_check
          %p571 = pneg %p85
        $region38: #{tpu_custom_call.1} parent=27 // pred_check_branch
          %573 = sbr.rel (%p571) target = $region40
        $region39: #{tpu_custom_call.1} parent=27 // pred_region
          %s575 = ssub.s32 4096, 4096
          %576 = vsyncadd %s567, %s575
          %s577 = smul.addr %s20, 32
          %s578 = smul.addr %s577, 128
          %s579 = scalar_lea.hbm %s2, %s578
          %s580 = sshll.u32 %s570, 4
          %s581 = int_to_ptr.vmem [resolvable:$true] %s580
          %586 = dma.vmem_to_hbm [thread:$0]  %s581, 4096, %s579, %s567, 256, 256, 16
        $region40: #{tpu_custom_call.1} parent=27 // pred_fallthru
          _
      $region28: #{tpu_custom_call.1} parent=5 // pred_fallthru
        _
      %p587 = scmp.le.s32.totalorder 2, %s15
      // Predicated region
      $region41: #{tpu_custom_call.1} parent=5 // pred_check
        %p588 = pneg %p587
      $region42: #{tpu_custom_call.1} parent=5 // pred_check_branch
        %590 = sbr.rel (%p588) target = $region44
      $region43: #{tpu_custom_call.1} parent=5 // pred_region
        %s591 = ssub.s32 %s15, 2
        // Predicated region
        $region45: #{tpu_custom_call.1} parent=43 // pred_check
          %p592 = pneg %p91
        $region46: #{tpu_custom_call.1} parent=43 // pred_check_branch
          %594 = sbr.rel (%p592) target = $region48
        $region47: #{tpu_custom_call.1} parent=43 // pred_region
          %s595 = sand.u32 %s76, 1
          %s596 = scalar_lea.sflag [#allocation4], %s595
          %s597 = sand.u32 %s76, 1
          %s598 = smul.addr %s597, 256
          %s599 = scalar_lea.vmem [#allocation7], %s598
          %600 = dma.done %s596, 4096
        $region48: #{tpu_custom_call.1} parent=43 // pred_fallthru
          _
      $region44: #{tpu_custom_call.1} parent=5 // pred_fallthru
        _
    $region6: #{tpu_custom_call.1} parent=1 // loop_footer
      %s19 = sadd.s32 1, %s15
    $region7: #{tpu_custom_call.1} parent=1 // loop_footer_branch
      %14 = sbr.rel target = $region3
    $region8: #{tpu_custom_call.1} parent=1 // loop_exit
      _
    %601 = vsyncpa [#allocation3], 1
    %s602 = scalar_lea.sflag [#allocation3], 1
    %603 = vsyncpa %s602, 1
    %604 = vsyncpa [#allocation6], 1
    %605 = vsyncpa [#allocation4], 1
    %s606 = scalar_lea.sflag [#allocation4], 1
    %607 = vsyncpa %s606, 1

</llo_original>
